<compile_context>
chip_gen: v7x
topology: tpu7x:2x2x1
jax: 0.10.0
libtpu: 0.0.40
codegen_flags: <defaults>
</compile_context>

<pallas_src>
import math

import jax
import jax.numpy as jnp
from jax.experimental import pallas as pl
from jax.experimental.pallas import tpu as pltpu


def _dma_copy_kernel(src_ref, dst_ref, sem):
    # Single whole-array DMA: HBM -> HBM. No VMEM staging, no per-tile pipeline.
    cp = pltpu.make_async_copy(src_ref, dst_ref, sem)
    cp.start()
    cp.wait()


def _pixels_copy(pixels):
    """Materialize a fresh HBM buffer holding `pixels` via one contiguous DMA."""
    H, W = pixels.shape
    nbytes = H * W * pixels.dtype.itemsize
    return pl.pallas_call(
        _dma_copy_kernel,
        out_shape=jax.ShapeDtypeStruct((H, W), pixels.dtype),
        in_specs=[pl.BlockSpec(memory_space=pl.ANY)],
        out_specs=pl.BlockSpec(memory_space=pl.ANY),
        scratch_shapes=[pltpu.SemaphoreType.DMA(())],
        # Pure memory-bound identity copy: read H*W + write H*W bytes, no flops.
        cost_estimate=pl.CostEstimate(
            flops=0, transcendentals=0, bytes_accessed=2 * nbytes
        ),
    )(pixels)


def pixels_forward(pixels, *, materialize=False):
    """Pallas implementation of Pixels.forward(): returns the pixel parameter tensor.

    Default (materialize=False): pure pass-through — return the parameter array
    itself, exactly like the PyTorch module (zero HBM traffic, zero launch cost).

    materialize=True: produce a distinct output buffer with a single HBM->HBM DMA
    (no VMEM round trip, no per-grid-step pipeline overhead) — use this only if a
    downstream consumer requires a non-aliased copy.
    """
    if not materialize:
        return pixels
    return _pixels_copy(pixels)


if __name__ == "__main__":
    key = jax.random.PRNGKey(0)

    # kx/ky grids define the pixel-plane shape; forward() only returns `pixels`.
    P_shape = (16, 128)
    ky_1d = jnp.linspace(-1.0, 1.0, P_shape[0])
    kx_1d = jnp.linspace(-1.0, 1.0, P_shape[1])
    ky, kx = jnp.meshgrid(ky_1d, kx_1d, indexing="ij")

    # The module's default init would be zeros_like(kx); use deterministic random
    # phases so the pass-through is actually exercised.
    pixels = jax.random.uniform(
        key, P_shape, jnp.float32, minval=-math.pi, maxval=math.pi
    )

    # Default path: zero-cost pass-through, matching Pixels.forward() semantics.
    P = pixels_forward(pixels)
    P = jax.block_until_ready(P)
    assert P.shape == P_shape and P.dtype == pixels.dtype
    assert jnp.array_equal(P, pixels), "forward() must return the pixels parameter unchanged"

    # Materialized path: exercise the Pallas single-DMA copy kernel on TPU.
    P_copy = pixels_forward(pixels, materialize=True)
    P_copy = jax.block_until_ready(P_copy)
    assert P_copy.shape == P_shape and P_copy.dtype == pixels.dtype
    assert jnp.array_equal(P_copy, pixels), "DMA copy must be bit-exact"

    print("KERNEL_OK")
</pallas_src>

<mosaic_0001>
module attributes {stable_mosaic.version = 11 : i64} {
  func.func @_dma_copy_kernel(%arg0: memref<16x128xf32, #tpu.memory_space<any>>, %arg1: memref<16x128xf32, #tpu.memory_space<any>>, %arg2: memref<!tpu.dma_semaphore, #tpu.memory_space<semaphore_mem>>) attributes {dimension_semantics = [], scalar_prefetch = 0 : i64, scratch_operands = 1 : i64, tpu.core_type = #tpu.core_type<tc>} {
    tpu.enqueue_dma source(%arg0 : memref<16x128xf32, #tpu.memory_space<any>>) target(%arg1 : memref<16x128xf32, #tpu.memory_space<any>>) target_semaphore(%arg2 : memref<!tpu.dma_semaphore, #tpu.memory_space<semaphore_mem>>)
    tpu.wait_dma2 semaphore(%arg2 : memref<!tpu.dma_semaphore, #tpu.memory_space<semaphore_mem>>) src(%arg0 : memref<16x128xf32, #tpu.memory_space<any>>) dst(%arg1 : memref<16x128xf32, #tpu.memory_space<any>>)
    return
  }
}

</mosaic_0001>

<llo_original>
// kernel: tpu_custom_call.1
$region0: #{tpu_custom_call.1}
  #allocation0 [shape = 'u32[]', space=smem, size = 0x4, offset = 0x4, fixed_abs, tag = 'smem constant byte address 0x4 - core index']
  #allocation1 [shape = 'u32[144,128]{1,0:T(1,128)}', space=vmem, size = 0x12000, scoped, tag = 'internal scratch']
  #allocation2 [shape = 's32[1]{0}', space=sflag, size = 0x4, scoped, tag = 'scratch operand']
  #allocation3 [shape = 's32[]', space=sflag, size = 0x4, offset = 0, fixed_abs, tag = 'sflag constant byte address 0x0 - dummy sync flag']
  #allocation4 [shape = 'u32[0]{0}', space=smem, size = 0, offset = 0, fixed_abs, tag = 'smem constant byte address 0x0 - null']
  %s0 = inlined_call_operand.hbm [shape: f32[16,128], index: 0, kind: input, shape index: {}]
  %s1 = inlined_call_operand.hbm [shape: f32[16,128], index: 1, kind: output, shape index: {}]
  %s2 = sld [smem:[#allocation0]]
  $region2: #{tpu_custom_call.1} parent=0
    _
  %s4 = ssub.s32 1, %s2
  %s5 = scalar_select 0, %s4, %s2
  %s7 = sshll.u32 1, 14
  %s8 = sxor.u32 4294967295, %s7
  %s11 = sshll.u32 3, 24
  %s12 = sxor.u32 4294967295, %s11
  %s13 = sand.u32 0, %s12
  %s15 = sor.u32 %s13, 0
  %18 = dma.general %s0, 256, %s1, [#allocation2], [#allocation3], [#allocation4], %s15, 0
  %s19 = smul.u32 16, 1
  %s20 = sshll.u32 %s19, 4
  %21 = dma.done [#allocation2], %s20
  %22 = vsyncmov [#allocation2]
  %s23 = vpop.sfrf %22
  %p24 = scmp.eq.s32.totalorder %s23, 0
  %p25 = pneg %p24
  %27 = shalt.err (%p25)

</llo_original>
